<compile_context>
chip_gen: v7x
topology: tpu7x:2x2x1
jax: 0.10.0
libtpu: 0.0.40
codegen_flags: <defaults>
</compile_context>

<pallas_src>
from functools import partial

import numpy as np
import jax
import jax.numpy as jnp
from jax import lax
from jax.experimental import pallas as pl
from jax.experimental.pallas import tpu as pltpu


def encoder_kernel(w00_ref, wblk_ref, patches_ref, scatter_ref, out_ref, *, bs, kk):
    """Single grid step processes the whole (small) batch.

    w00_ref     : (1, 1)        f32 SMEM -- fallback scalar for all-zero patches
    wblk_ref    : (bs, bs*KK)   f32 VMEM -- block-diagonal surrogate weights
    patches_ref : (bs*KK, P)    f32 VMEM -- im2col slab, row r = b*KK + k
    scatter_ref : (P, H*W)      bf16/f32 VMEM -- overlap-add scatter, 1/coverage
                                                + crop folded in (un-tiled)
    out_ref     : (bs, H*W)     f32 VMEM -- lane-dense patch-response map
    """
    patches = patches_ref[...]                                           # (bs*KK, P)

    # Per-patch projection on the MXU: block-diagonal LHS -> (bs, P) directly.
    dot = jnp.dot(wblk_ref[...], patches,
                  preferred_element_type=jnp.float32)                    # (bs, P)

    # Per-patch squared norm: VPU square + per-batch sublane (XLU) reductions.
    # bs is tiny and static, so the Python loop is fully unrolled at trace time.
    psq = patches * patches                                              # (bs*KK, P)
    sq = jnp.concatenate(
        [jnp.sum(psq[b * kk:(b + 1) * kk, :], axis=0, keepdims=True)
         for b in range(bs)],
        axis=0)                                                          # (bs, P)

    # Surrogate circuit: amplitude-normalize the patch, project onto the
    # weight-derived direction, swap-test-style expval in [0, 1].
    # rsqrt goes to the EUP; clamping sq avoids a transient 0/0 in the
    # unselected where-branch (all-zero patch keeps |0...0>).
    w00 = w00_ref[0, 0]                                                  # SMEM scalar
    amp = jnp.where(sq > 0.0, dot * lax.rsqrt(jnp.maximum(sq, 1e-30)), w00)
    val = 0.5 * (1.0 + amp * amp)                                        # (bs, P)

    # Overlap-add scatter + coverage-average + crop: one MXU matmul.
    out_ref[...] = jnp.dot(val, scatter_ref[...].astype(jnp.float32),
                           preferred_element_type=jnp.float32)           # (bs, H*W)


@partial(jax.jit, static_argnames=("image_size", "kernel_size", "stride", "padding"))
def encoder_forward(img, w2d, *, image_size, kernel_size, stride, padding):
    """img: (bs, ch, H, W) NCHW float32; returns (bs, image_size, image_size)."""
    bs = img.shape[0]
    H = W = image_size
    ks = kernel_size
    Hp = image_size + 2 * padding
    ppr = (Hp - ks) // stride + 1
    P = ppr * ppr
    KK = ks * ks

    # ---- channel 0 + zero-pad (forward pass only reads channel 0) ----
    x = img[:, 0, :, :].astype(jnp.float32)
    if padding > 0:
        x = jnp.pad(x, ((0, 0), (padding, padding), (padding, padding)))

    # ---- trace-time constants (numpy): im2col indices, coverage, scatter ----
    # All of this runs once at trace time (jit cache keyed on static hyperparams)
    # and is baked into the executable as device constants.
    p_idx = np.arange(P)
    q_idx = np.arange(KK)
    r0 = (p_idx // ppr) * stride                        # patch start rows   (P,)
    c0 = (p_idx % ppr) * stride                         # patch start cols   (P,)
    row_idx = r0[None, :] + (q_idx // ks)[:, None]      # (KK, P)
    col_idx = c0[None, :] + (q_idx % ks)[:, None]       # (KK, P)

    cnt = np.zeros((Hp, Hp), np.float32)                # coverage on padded grid
    for p in range(P):
        cnt[r0[p]:r0[p] + ks, c0[p]:c0[p] + ks] += 1.0
    inv_cnt = np.where(cnt > 0, 1.0 / np.maximum(cnt, 1.0), 0.0).astype(np.float32)

    # Scatter matrix restricted to the interior (crop applied), with the
    # per-pixel 1/coverage folded into its columns.  NOT tiled over batch.
    S = np.zeros((P, H * W), np.float32)
    for p in range(P):
        for i in range(ks):
            for l in range(ks):
                r = r0[p] + i - padding
                c = c0[p] + l - padding
                if 0 <= r < H and 0 <= c < W:
                    S[p, r * W + c] = inv_cnt[r0[p] + i, c0[p] + l]

    # Store the scatter constant in bf16 only when exactly representable
    # (1/coverage is a power of two for this config) -> halves the dominant DMA
    # with zero accuracy loss; cast back to f32 inside the kernel.
    S_bf16 = S.astype(jnp.bfloat16)
    if np.array_equal(S_bf16.astype(np.float32), S):
        scatter = jnp.asarray(S_bf16)
    else:
        scatter = jnp.asarray(S)

    # ---- im2col slab (wrapper-side layout plumbing, row r = b*KK + k) ----
    patches = x[:, row_idx, col_idx]                    # (bs, KK, P)
    patches = patches.reshape(bs * KK, P)

    # Block-diagonal surrogate weights: row b carries w in columns [b*KK, (b+1)*KK).
    w_row = w2d.reshape(1, KK).astype(jnp.float32)
    wblk = jnp.kron(jnp.eye(bs, dtype=jnp.float32), w_row)   # (bs, bs*KK)
    w00 = w2d[0:1, 0:1].astype(jnp.float32)                  # (1, 1) SMEM scalar

    out_flat = pl.pallas_call(
        partial(encoder_kernel, bs=bs, kk=KK),
        out_shape=jax.ShapeDtypeStruct((bs, H * W), jnp.float32),
        grid=(1,),
        in_specs=[
            pl.BlockSpec(memory_space=pltpu.MemorySpace.SMEM),   # w00 scalar
            pl.BlockSpec((bs, bs * KK), lambda i: (0, 0)),       # wblk
            pl.BlockSpec((bs * KK, P), lambda i: (0, 0)),        # patches
            pl.BlockSpec((P, H * W), lambda i: (0, 0)),          # scatter (un-tiled)
        ],
        out_specs=pl.BlockSpec((bs, H * W), lambda i: (0, 0)),
        compiler_params=pltpu.CompilerParams(dimension_semantics=("parallel",)),
    )(w00, wblk, patches, scatter)

    return out_flat.reshape(bs, H, W)


def reference_forward(img, w2d, *, image_size, kernel_size, stride, padding):
    """Pure-JAX reference of the same (surrogate) forward pass for validation."""
    bs = img.shape[0]
    ks = kernel_size
    x = img[:, 0, :, :].astype(jnp.float32)
    if padding > 0:
        x = jnp.pad(x, ((0, 0), (padding, padding), (padding, padding)))
    Hp = image_size + 2 * padding
    ppr = (Hp - ks) // stride + 1
    outs = []
    for b in range(bs):
        m = jnp.zeros((Hp, Hp), jnp.float32)
        c = jnp.zeros((Hp, Hp), jnp.float32)
        for p in range(ppr * ppr):
            rs = (p // ppr) * stride
            cs = (p % ppr) * stride
            patch = x[b, rs:rs + ks, cs:cs + ks]
            sq = jnp.sum(patch * patch)
            dot = jnp.sum(patch * w2d)
            amp = jnp.where(sq > 0.0, dot * lax.rsqrt(jnp.maximum(sq, 1e-30)),
                            w2d[0, 0])
            val = 0.5 * (1.0 + amp * amp)
            m = m.at[rs:rs + ks, cs:cs + ks].add(val)
            c = c.at[rs:rs + ks, cs:cs + ks].add(1.0)
        mm = m / c
        if padding > 0:
            mm = mm[padding:-padding, padding:-padding]
        outs.append(mm)
    return jnp.stack(outs)


if __name__ == "__main__":
    # Module hyper-parameters (small, consistent with the forward pass).
    image_size = 16
    kernel_size = 4
    stride = 2
    padding = 1
    wires = 4                     # 2**wires >= kernel_size**2 for AmplitudeEmbedding
    discarded_wires = 2
    mps_layers = 2
    n_block_wires = 2
    n_params_block = 2
    seed = 0
    bs, ch = 2, 1

    # Deterministic parameter init (weights_mps: [mps_layers, n_blocks, n_params_block]).
    n_blocks = wires - 1          # qml.MPS.get_n_blocks(range(wires), 2) == wires - 1
    weights_mps = jax.random.normal(
        jax.random.PRNGKey(seed), (mps_layers, n_blocks, n_params_block), jnp.float32)

    # Deterministic map weights_mps -> per-pixel patch weights for the surrogate circuit.
    theta = jnp.sum(jnp.cos(weights_mps))
    m_idx = jnp.arange(kernel_size * kernel_size, dtype=jnp.float32)
    w2d = jnp.cos(theta * (m_idx + 1.0) / (kernel_size * kernel_size)).reshape(
        kernel_size, kernel_size)

    # Deterministic input image (NCHW).
    img = jax.random.normal(jax.random.PRNGKey(0), (bs, ch, image_size, image_size),
                            jnp.float32)

    out = encoder_forward(img, w2d, image_size=image_size, kernel_size=kernel_size,
                          stride=stride, padding=padding)
    out = jax.block_until_ready(out)

    ref = reference_forward(img, w2d, image_size=image_size, kernel_size=kernel_size,
                            stride=stride, padding=padding)
    np.testing.assert_allclose(np.asarray(out), np.asarray(ref), rtol=1e-4, atol=1e-5)
    assert out.shape == (bs, image_size, image_size)

    print("KERNEL_OK")
</pallas_src>

<mosaic_0001>
module attributes {stable_mosaic.version = 11 : i64} {
  func.func @encoder_kernel(%arg0: i32, %arg1: memref<1x1xf32, #tpu.memory_space<smem>>, %arg2: memref<2x32xf32, #tpu.memory_space<vmem>>, %arg3: memref<32x64xf32, #tpu.memory_space<vmem>>, %arg4: memref<64x256xbf16, #tpu.memory_space<vmem>>, %arg5: memref<2x256xf32, #tpu.memory_space<vmem>>) attributes {dimension_semantics = [#tpu.dimension_semantics<parallel>], iteration_bounds = array<i64: 1>, scalar_prefetch = 0 : i64, scratch_operands = 0 : i64, tpu.core_type = #tpu.core_type<tc>, window_params = [{transform_indices = @transform_0, window_bounds = array<i64: 1, 1>}, {pipeline_mode = #tpu.pipeline_mode<synchronous>, transform_indices = @transform_1, window_bounds = array<i64: 2, 32>}, {pipeline_mode = #tpu.pipeline_mode<synchronous>, transform_indices = @transform_2, window_bounds = array<i64: 32, 64>}, {pipeline_mode = #tpu.pipeline_mode<synchronous>, transform_indices = @transform_3, window_bounds = array<i64: 64, 256>}, {pipeline_mode = #tpu.pipeline_mode<synchronous>, transform_indices = @transform_4, window_bounds = array<i64: 2, 256>}]} {
    %c0 = arith.constant 0 : index
    %c0_0 = arith.constant 0 : index
    %0 = vector.load %arg3[%c0, %c0_0] : memref<32x64xf32, #tpu.memory_space<vmem>>, vector<32x64xf32>
    %c0_1 = arith.constant 0 : index
    %c0_2 = arith.constant 0 : index
    %1 = vector.load %arg2[%c0_1, %c0_2] : memref<2x32xf32, #tpu.memory_space<vmem>>, vector<2x32xf32>
    %cst = arith.constant dense<0.000000e+00> : vector<2x64xf32>
    %2 = tpu.matmul %1, %0, %cst {dimension_numbers = #tpu.dot_dimension_numbers<[1], [0], [0], [1], [0, 0, 1, 1], [], []>} : vector<2x32xf32>, vector<32x64xf32>, vector<2x64xf32> -> vector<2x64xf32>
    %3 = arith.mulf %0, %0 : vector<32x64xf32>
    %4 = vector.extract_strided_slice %3 {offsets = [0, 0], sizes = [16, 64], strides = [1, 1]} : vector<32x64xf32> to vector<16x64xf32>
    %cst_3 = arith.constant dense<0.000000e+00> : vector<64xf32>
    %5 = vector.multi_reduction <add>, %4, %cst_3 [0] : vector<16x64xf32> to vector<64xf32>
    %6 = vector.shape_cast %5 : vector<64xf32> to vector<1x64xf32>
    %7 = vector.extract_strided_slice %3 {offsets = [16, 0], sizes = [16, 64], strides = [1, 1]} : vector<32x64xf32> to vector<16x64xf32>
    %cst_4 = arith.constant dense<0.000000e+00> : vector<64xf32>
    %8 = vector.multi_reduction <add>, %7, %cst_4 [0] : vector<16x64xf32> to vector<64xf32>
    %9 = vector.shape_cast %8 : vector<64xf32> to vector<1x64xf32>
    %10 = tpu.concatenate %6, %9 in 0 : vector<1x64xf32>, vector<1x64xf32> -> vector<2x64xf32>
    %c0_5 = arith.constant 0 : index
    %c0_6 = arith.constant 0 : index
    %11 = memref.load %arg1[%c0_5, %c0_6] : memref<1x1xf32, #tpu.memory_space<smem>>
    %cst_7 = arith.constant 0.000000e+00 : f32
    %12 = vector.broadcast %cst_7 : f32 to vector<2x64xf32>
    %13 = arith.cmpf ogt, %10, %12 : vector<2x64xf32>
    %cst_8 = arith.constant 1.000000e-30 : f32
    %14 = vector.broadcast %cst_8 : f32 to vector<2x64xf32>
    %15 = arith.maximumf %10, %14 : vector<2x64xf32>
    %16 = math.rsqrt %15 : vector<2x64xf32>
    %17 = arith.mulf %2, %16 : vector<2x64xf32>
    %18 = vector.broadcast %11 : f32 to vector<2x64xf32>
    %19 = arith.select %13, %17, %18 : vector<2x64xi1>, vector<2x64xf32>
    %20 = arith.mulf %19, %19 : vector<2x64xf32>
    %cst_9 = arith.constant 1.000000e+00 : f32
    %21 = vector.broadcast %cst_9 : f32 to vector<2x64xf32>
    %22 = arith.addf %21, %20 : vector<2x64xf32>
    %cst_10 = arith.constant 5.000000e-01 : f32
    %23 = vector.broadcast %cst_10 : f32 to vector<2x64xf32>
    %24 = arith.mulf %23, %22 : vector<2x64xf32>
    %c0_11 = arith.constant 0 : index
    %c0_12 = arith.constant 0 : index
    %25 = vector.load %arg4[%c0_11, %c0_12] : memref<64x256xbf16, #tpu.memory_space<vmem>>, vector<64x256xbf16>
    %26 = arith.extf %25 : vector<64x256xbf16> to vector<64x256xf32>
    %cst_13 = arith.constant dense<0.000000e+00> : vector<2x256xf32>
    %27 = tpu.matmul %24, %26, %cst_13 {dimension_numbers = #tpu.dot_dimension_numbers<[1], [0], [0], [1], [0, 0, 1, 1], [], []>} : vector<2x64xf32>, vector<64x256xf32>, vector<2x256xf32> -> vector<2x256xf32>
    %c0_14 = arith.constant 0 : index
    %c0_15 = arith.constant 0 : index
    %28 = vector.load %arg5[%c0_14, %c0_15] : memref<2x256xf32, #tpu.memory_space<vmem>>, vector<2x256xf32>
    tpu.vector_store %arg5[%c0_14, %c0_15], %27 {strides = array<i32>} : memref<2x256xf32, #tpu.memory_space<vmem>>, vector<2x256xf32>,
    return
  }
  func.func @transform_0(%arg0: i32) -> (i32, i32) {
    %c0_i32 = arith.constant 0 : i32
    %c0_i32_0 = arith.constant 0 : i32
    %c0_i32_1 = arith.constant 0 : i32
    return %c0_i32, %c0_i32_0 : i32, i32
  }
  func.func @transform_1(%arg0: i32) -> (i32, i32) {
    %c0_i32 = arith.constant 0 : i32
    %c0_i32_0 = arith.constant 0 : i32
    %c0_i32_1 = arith.constant 0 : i32
    return %c0_i32, %c0_i32_0 : i32, i32
  }
  func.func @transform_2(%arg0: i32) -> (i32, i32) {
    %c0_i32 = arith.constant 0 : i32
    %c0_i32_0 = arith.constant 0 : i32
    %c0_i32_1 = arith.constant 0 : i32
    return %c0_i32, %c0_i32_0 : i32, i32
  }
  func.func @transform_3(%arg0: i32) -> (i32, i32) {
    %c0_i32 = arith.constant 0 : i32
    %c0_i32_0 = arith.constant 0 : i32
    %c0_i32_1 = arith.constant 0 : i32
    return %c0_i32, %c0_i32_0 : i32, i32
  }
  func.func @transform_4(%arg0: i32) -> (i32, i32) {
    %c0_i32 = arith.constant 0 : i32
    %c0_i32_0 = arith.constant 0 : i32
    %c0_i32_1 = arith.constant 0 : i32
    return %c0_i32, %c0_i32_0 : i32, i32
  }
}

</mosaic_0001>

<llo_original>
// kernel: encoder_forward.1
$region0: #{encoder_forward.1}
  #allocation0 [shape = 'u32[]', space=smem, size = 0x4, offset = 0x4, fixed_abs, tag = 'smem constant byte address 0x4 - core index']
  #allocation1 [shape = 'u32[144,128]{1,0:T(1,128)}', space=vmem, size = 0x12000, scoped, tag = 'internal scratch']
  #allocation2 [shape = 'f32[1,1]{1,0:T(1,128)S(6)}', space=smem, size = 0x200, scoped, tag = 'scoped memory for encoder_forward.1']
  %s0 = inlined_call_operand.<no memory space> [shape: f32[1,1], index: 0, kind: input, shape index: {}]
  %s1 = inlined_call_operand.vmem [shape: f32[2,32], index: 1, kind: input, shape index: {}]
  %s2 = inlined_call_operand.vmem [shape: f32[32,64], index: 2, kind: input, shape index: {}]
  %s3 = inlined_call_operand.vmem [shape: bf16[64,256], index: 3, kind: input, shape index: {}]
  %s4 = inlined_call_operand.vmem [shape: f32[2,256], index: 4, kind: output, shape index: {}]
  %s5 = sld [smem:[#allocation0]]
  $region26: #{encoder_forward.1} parent=0
    _
  %s7 = ssub.s32 1, %s5
  %s8 = scalar_select 0, %s7, %s5
  %9 = sst [smem:[#allocation2]] %s0
  // Predicated region
  $region2: #{encoder_forward.1} parent=0 // pred_check
    _
  $region3: #{encoder_forward.1} parent=0 // pred_check_branch
    %11 = sbr.rel (0) target = $region5
  $region4: #{encoder_forward.1} parent=0 // pred_region
    _
  $region5: #{encoder_forward.1} parent=0 // pred_fallthru
    _
  // Predicated region
  $region6: #{encoder_forward.1} parent=0 // pred_check
    _
  $region7: #{encoder_forward.1} parent=0 // pred_check_branch
    %13 = sbr.rel (0) target = $region9
  $region8: #{encoder_forward.1} parent=0 // pred_region
    _
  $region9: #{encoder_forward.1} parent=0 // pred_fallthru
    _
  // Predicated region
  $region10: #{encoder_forward.1} parent=0 // pred_check
    _
  $region11: #{encoder_forward.1} parent=0 // pred_check_branch
    %15 = sbr.rel (0) target = $region13
  $region12: #{encoder_forward.1} parent=0 // pred_region
    _
  $region13: #{encoder_forward.1} parent=0 // pred_fallthru
    _
  // Predicated region
  $region14: #{encoder_forward.1} parent=0 // pred_check
    _
  $region15: #{encoder_forward.1} parent=0 // pred_check_branch
    %17 = sbr.rel (0) target = $region17
  $region16: #{encoder_forward.1} parent=0 // pred_region
    _
  $region17: #{encoder_forward.1} parent=0 // pred_fallthru
    _
  %v18 = vld [vmem:[%s2] sm:$0xff]
  %v19 = vld [vmem:[%s2 + $0x8] sm:$0xff]
  %v20 = vld [vmem:[%s2 + $0x10] sm:$0xff]
  %v21 = vld [vmem:[%s2 + $0x18] sm:$0xff]
  %v22 = vld [vmem:[%s1] sm:$0x3]
  %vm23 = vcmask 261120
  %v25 = vsel %vm23, %v22, 0
  %27 = vmatprep.subr.mxu0 0.0
  %28 = vmatpush1.msra.mxu0 %v18
  %29 = vmatprep.subr.mxu0 0.0
  %30 = vmatpush1.msra.mxu0 %v19
  %31 = vmatprep.subr.mxu0 0.0
  %32 = vmatpush1.msra.mxu0 %v20
  %33 = vmatprep.subr.mxu0 0.0
  %34 = vmatpush1.msra.mxu0 %v21
  %35 = vmatprep.subr.mxu0 0.0
  %36 = vmatpush1.msra.mxu0 0.0
  %37 = vmatprep.subr.mxu0 0.0
  %38 = vmatpush1.msra.mxu0 0.0
  %39 = vmatprep.subr.mxu0 0.0
  %40 = vmatpush1.msra.mxu0 0.0
  %41 = vmatprep.subr.mxu0 0.0
  %42 = vmatpush1.msra.mxu0 0.0
  %43 = vmatprep.subr.mxu0 0.0
  %44 = vmatpush1.msra.mxu0 0.0
  %45 = vmatprep.subr.mxu0 0.0
  %46 = vmatpush1.msra.mxu0 0.0
  %47 = vmatprep.subr.mxu0 0.0
  %48 = vmatpush1.msra.mxu0 0.0
  %49 = vmatprep.subr.mxu0 0.0
  %50 = vmatpush1.msra.mxu0 0.0
  %51 = vmatprep.subr.mxu0 0.0
  %52 = vmatpush1.msra.mxu0 0.0
  %53 = vmatprep.subr.mxu0 0.0
  %54 = vmatpush1.msra.mxu0 0.0
  %55 = vmatprep.subr.mxu0 0.0
  %56 = vmatpush1.msra.mxu0 0.0
  %57 = vmatprep.subr.mxu0 0.0
  %58 = vmatpush1.msra.mxu0 0.0
  %59 = vmatprep.subr.mxu0 0.0
  %60 = vmatpush1.msra.mxu0 0.0
  %61 = vmatprep.subr.mxu0 0.0
  %62 = vmatpush1.msra.mxu0 0.0
  %63 = vmatprep.subr.mxu0 0.0
  %64 = vmatpush1.msra.mxu0 0.0
  %65 = vmatprep.subr.mxu0 0.0
  %66 = vmatpush1.msra.mxu0 0.0
  %67 = vmatprep.subr.mxu0 0.0
  %68 = vmatpush1.msra.mxu0 0.0
  %69 = vmatprep.subr.mxu0 0.0
  %70 = vmatpush1.msra.mxu0 0.0
  %71 = vmatprep.subr.mxu0 0.0
  %72 = vmatpush1.msra.mxu0 0.0
  %73 = vmatprep.subr.mxu0 0.0
  %74 = vmatpush1.msra.mxu0 0.0
  %75 = vmatprep.subr.mxu0 0.0
  %76 = vmatpush1.msra.mxu0 0.0
  %77 = vmatprep.subr.mxu0 0.0
  %78 = vmatpush1.msra.mxu0 0.0
  %79 = vmatprep.subr.mxu0 0.0
  %80 = vmatpush1.msra.mxu0 0.0
  %81 = vmatprep.subr.mxu0 0.0
  %82 = vmatpush1.msra.mxu0 0.0
  %83 = vmatprep.subr.mxu0 0.0
  %84 = vmatpush1.msra.mxu0 0.0
  %85 = vmatprep.subr.mxu0 0.0
  %86 = vmatpush1.msra.mxu0 0.0
  %87 = vmatprep.subr.mxu0 0.0
  %88 = vmatpush1.msra.mxu0 0.0
  %89 = vmatprep.subr.mxu0 0.0
  %90 = vmatpush1.msra.mxu0 0.0
  %91 = vmatprep.mubr.f32.mxu0 0.0
  %92 = vmatmul.mubr.f32.gmra.mrb[0].mxu0 %v25
  %v93 = vpop.f32.mrb[0].mxu0
  %v94 = vadd.f32 0.0, %v93
  %v95 = vpop.f32.mrb[0].mxu0
  %96 = vdwg.mxu0
  %v97 = vmul.f32 %v18, %v18
  %v98 = vmul.f32 %v19, %v19
  %v99 = vmul.f32 %v20, %v20
  %v100 = vmul.f32 %v21, %v21
  %vm101 = vcmask 523264
  %v102 = vsel %vm101, %v97, 0.0
  %v103 = vsel %vm101, %v98, 0.0
  %v104 = vadd.f32 %v102, %v103
  %v105 = vrot.slane %v104, 4
  %v106 = vadd.f32 %v104, %v105
  %v107 = vrot.slane %v106, 2
  %v108 = vadd.f32 %v106, %v107
  %v109 = vrot.slane %v108, 1
  %v110 = vadd.f32 %v108, %v109
  %v111 = vsel %vm101, %v99, 0.0
  %v112 = vsel %vm101, %v100, 0.0
  %v113 = vadd.f32 %v111, %v112
  %v114 = vrot.slane %v113, 4
  %v115 = vadd.f32 %v113, %v114
  %v116 = vrot.slane %v115, 2
  %v117 = vadd.f32 %v115, %v116
  %v118 = vrot.slane %v117, 1
  %v119 = vadd.f32 %v117, %v118
  %vm120 = vcmask 1040384
  %v121 = vsel %vm120, %v110, %v119
  %s122 = sld [smem:[#allocation2]]
  %vm123 = vcmp.gt.f32.partialorder %v121, 0.0
  %v124 = vmax.f32 %v121, 1e-30
  %v125 = vrsqrt.pop %v124
  %v126 = vmul.f32 %v94, %v125
  %v127 = vstv %s122
  %v128 = vsel %vm123, %v126, %v127
  %v129 = vmul.f32 %v128, %v128
  %v130 = vadd.f32 %v129, 1.0
  %v131 = vmul.f32 %v130, 0.5
  %v132 = vld [vmem:[%s3] sm:$0xff]
  %v133 = vld [vmem:[%s3 + $0x8] sm:$0xff]
  %v134 = vld [vmem:[%s3 + $0x10] sm:$0xff]
  %v135 = vld [vmem:[%s3 + $0x18] sm:$0xff]
  %v136 = vld [vmem:[%s3 + $0x20] sm:$0xff]
  %v137 = vld [vmem:[%s3 + $0x28] sm:$0xff]
  %v138 = vld [vmem:[%s3 + $0x30] sm:$0xff]
  %v139 = vld [vmem:[%s3 + $0x38] sm:$0xff]
  %v140 = vunpack.c.l.bf16 %v132
  %v141 = vunpack.c.h.bf16 %v132
  %v142 = vunpack.c.l.bf16 %v133
  %v143 = vunpack.c.h.bf16 %v133
  %v144 = vunpack.c.l.bf16 %v134
  %v145 = vunpack.c.h.bf16 %v134
  %v146 = vunpack.c.l.bf16 %v135
  %v147 = vunpack.c.h.bf16 %v135
  %v148 = vunpack.c.l.bf16 %v136
  %v149 = vunpack.c.h.bf16 %v136
  %v150 = vunpack.c.l.bf16 %v137
  %v151 = vunpack.c.h.bf16 %v137
  %v152 = vunpack.c.l.bf16 %v138
  %v153 = vunpack.c.h.bf16 %v138
  %v154 = vunpack.c.l.bf16 %v139
  %v155 = vunpack.c.h.bf16 %v139
  %v157 = vsel %vm101, %v131, 0
  %159 = vmatprep.subr.mxu0 %v141
  %160 = vmatpush1.msra.mxu0 %v140
  %161 = vmatprep.subr.mxu0 %v143
  %162 = vmatpush1.msra.mxu0 %v142
  %163 = vmatprep.subr.mxu0 %v145
  %164 = vmatpush1.msra.mxu0 %v144
  %165 = vmatprep.subr.mxu0 %v147
  %166 = vmatpush1.msra.mxu0 %v146
  %167 = vmatprep.subr.mxu0 %v149
  %168 = vmatpush1.msra.mxu0 %v148
  %169 = vmatprep.subr.mxu0 %v151
  %170 = vmatpush1.msra.mxu0 %v150
  %171 = vmatprep.subr.mxu0 %v153
  %172 = vmatpush1.msra.mxu0 %v152
  %173 = vmatprep.subr.mxu0 %v155
  %174 = vmatpush1.msra.mxu0 %v154
  %175 = vmatprep.subr.mxu0 0.0
  %176 = vmatpush1.msra.mxu0 0.0
  %177 = vmatprep.subr.mxu0 0.0
  %178 = vmatpush1.msra.mxu0 0.0
  %179 = vmatprep.subr.mxu0 0.0
  %180 = vmatpush1.msra.mxu0 0.0
  %181 = vmatprep.subr.mxu0 0.0
  %182 = vmatpush1.msra.mxu0 0.0
  %183 = vmatprep.subr.mxu0 0.0
  %184 = vmatpush1.msra.mxu0 0.0
  %185 = vmatprep.subr.mxu0 0.0
  %186 = vmatpush1.msra.mxu0 0.0
  %187 = vmatprep.subr.mxu0 0.0
  %188 = vmatpush1.msra.mxu0 0.0
  %189 = vmatprep.subr.mxu0 0.0
  %190 = vmatpush1.msra.mxu0 0.0
  %191 = vmatprep.subr.mxu0 0.0
  %192 = vmatpush1.msra.mxu0 0.0
  %193 = vmatprep.subr.mxu0 0.0
  %194 = vmatpush1.msra.mxu0 0.0
  %195 = vmatprep.subr.mxu0 0.0
  %196 = vmatpush1.msra.mxu0 0.0
  %197 = vmatprep.subr.mxu0 0.0
  %198 = vmatpush1.msra.mxu0 0.0
  %199 = vmatprep.subr.mxu0 0.0
  %200 = vmatpush1.msra.mxu0 0.0
  %201 = vmatprep.subr.mxu0 0.0
  %202 = vmatpush1.msra.mxu0 0.0
  %203 = vmatprep.subr.mxu0 0.0
  %204 = vmatpush1.msra.mxu0 0.0
  %205 = vmatprep.subr.mxu0 0.0
  %206 = vmatpush1.msra.mxu0 0.0
  %207 = vmatprep.subr.mxu0 0.0
  %208 = vmatpush1.msra.mxu0 0.0
  %209 = vmatprep.subr.mxu0 0.0
  %210 = vmatpush1.msra.mxu0 0.0
  %211 = vmatprep.subr.mxu0 0.0
  %212 = vmatpush1.msra.mxu0 0.0
  %213 = vmatprep.subr.mxu0 0.0
  %214 = vmatpush1.msra.mxu0 0.0
  %215 = vmatprep.subr.mxu0 0.0
  %216 = vmatpush1.msra.mxu0 0.0
  %217 = vmatprep.subr.mxu0 0.0
  %218 = vmatpush1.msra.mxu0 0.0
  %219 = vmatprep.subr.mxu0 0.0
  %220 = vmatpush1.msra.mxu0 0.0
  %221 = vmatprep.subr.mxu0 0.0
  %222 = vmatpush1.msra.mxu0 0.0
  %223 = vmatprep.mubr.f32.mxu0 0.0
  %224 = vmatmul.mubr.f32.gmra.mrb[0].mxu0 %v157
  %v225 = vpop.f32.mrb[0].mxu0
  %v226 = vadd.f32 0.0, %v225
  %v227 = vpop.f32.mrb[0].mxu0
  %v228 = vadd.f32 0.0, %v227
  %229 = vdwg.mxu0
  %v232 = vcombine.low %v226, %v228
  %v234 = vunpack.c.l.s4 1983009808
  %v235 = vunpack.c.0.s8 %v234
  %v236 = vlaneseq
  %v237 = vshrl.u32 %v236, 7
  %v238 = vsub.s32 %v235, %v237
  %v239 = vrot.slane %v232, %v238
  %241 = vst [vmem:[%s4] sm:$0xf] %v239
  // Predicated region
  $region18: #{encoder_forward.1} parent=0 // pred_check
    _
  $region19: #{encoder_forward.1} parent=0 // pred_check_branch
    %243 = sbr.rel (0) target = $region21
  $region20: #{encoder_forward.1} parent=0 // pred_region
    _
  $region21: #{encoder_forward.1} parent=0 // pred_fallthru
    _
  // Predicated region
  $region22: #{encoder_forward.1} parent=0 // pred_check
    _
  $region23: #{encoder_forward.1} parent=0 // pred_check_branch
    %245 = sbr.rel (0) target = $region25
  $region24: #{encoder_forward.1} parent=0 // pred_region
    _
  $region25: #{encoder_forward.1} parent=0 // pred_fallthru
    _

</llo_original>
